<compile_context>
chip_gen: v5e
topology: v5e:2x2
jax: 0.10.0
libtpu: 0.0.40
codegen_flags: <defaults>
</compile_context>

<pallas_src>
import numpy as np
import jax
import jax.numpy as jnp
from jax.experimental import pallas as pl
from jax.experimental.pallas import tpu as pltpu

VMEM_SPEC = pl.BlockSpec(memory_space=pltpu.MemorySpace.VMEM)


def make_fused_kernel(B, L, Cin, Cout, K, mp_k, mp_s, apM_k, apM_s, apm_k, apm_s):
    """Build the fused forward kernel + derived shape info."""
    assert L >= K, "conv window must fit the sequence"
    Lc = L - K + 1                                  # Conv1d: stride=1, pad=0, dil=1
    Lp_mp = (Lc - mp_k) // mp_s + 1
    Lp_apM = (Lc - apM_k) // apM_s + 1
    Lp_apm = (Lc - apm_k) // apm_s + 1
    for kk, ss, lp in ((mp_k, mp_s, Lp_mp), (apM_k, apM_s, Lp_apM), (apm_k, apm_s, Lp_apm)):
        assert kk <= Lc and (lp - 1) * ss + kk <= Lc, "pool window exceeds conv output"
    F = (2 * Lp_mp + Lp_apM + Lp_apm) * Cout        # x1_mp, x1_ap, x1_mp(again), x2_ap
    eps = 1e-5

    def sliding_max(z, kk):
        # z: (Lc, Cout) -> (Lc-kk+1, Cout); window max at every start offset, vectorized.
        W = Lc - kk + 1
        r = z[0:W, :]
        for off in range(1, kk):
            r = jnp.maximum(r, z[off:off + W, :])
        return r

    def sliding_sum(z, kk):
        W = Lc - kk + 1
        r = z[0:W, :]
        for off in range(1, kk):
            r = r + z[off:off + W, :]
        return r

    def flat_rows(m, Lp, ss):
        # Pick window starts p*ss and flatten lane-dense: feature index = p*Cout + c.
        # Lane-axis concat of rows is used instead of a sublane->lane reshape, which
        # Mosaic does not reliably lower for small unaligned tiles.
        return jnp.concatenate([m[p * ss:p * ss + 1, :] for p in range(Lp)], axis=-1)

    def kernel(x1_ref, x2_ref, w_ref, cb_ref, g_ref, be_ref,
               w1_ref, b1_ref, w2_ref, b2_ref, w3_ref, b3_ref, o_ref):
        # ---- conv1d as ONE im2col matmul over the stacked (x1, x2) batch ----
        x1 = x1_ref[...]                            # (B, L, Cin), channels on lanes
        x2 = x2_ref[...]
        xs = [x1[n] for n in range(B)] + [x2[n] for n in range(B)]          # (L, Cin) each
        lhs = jnp.concatenate(
            [jnp.concatenate([xb[k:k + Lc, :] for k in range(K)], axis=-1)  # (Lc, K*Cin)
             for xb in xs],
            axis=0)                                                          # (2B*Lc, K*Cin)
        y = jnp.dot(lhs, w_ref[...], preferred_element_type=jnp.float32)    # single MXU push
        y = jnp.maximum(y + cb_ref[...], 0.0)                               # bias + ReLU once

        # ---- pooling (vectorized) + lane-dense flatten + concat ----
        inv_apM = 1.0 / apM_k
        inv_apm = 1.0 / apm_k
        rows = []
        for n in range(B):
            y1 = y[n * Lc:(n + 1) * Lc, :]                # x1 branch, batch n
            y2 = y[(B + n) * Lc:(B + n + 1) * Lc, :]      # x2 branch, batch n
            f_mp1 = flat_rows(sliding_max(y1, mp_k), Lp_mp, mp_s)
            f_ap1 = flat_rows(sliding_sum(y1, apM_k) * inv_apM, Lp_apM, apM_s)
            f_ap2 = flat_rows(sliding_sum(y2, apm_k) * inv_apm, Lp_apm, apm_s)
            # NOTE: x2's maxpool is intentionally NOT computed — the reference module
            # overwrites it (`x2_mp = x1_mp.view(...)`), so x1's maxpool is reused.
            rows.append(jnp.concatenate([f_mp1, f_ap1, f_mp1, f_ap2], axis=-1))  # (1, F)
        feat = jnp.concatenate(rows, axis=0)                                     # (B, F)

        # ---- BatchNorm1d: training-mode batch statistics (biased variance) ----
        # gamma/beta arrive pre-permuted to the kernel's lane-dense feature order.
        mean = jnp.mean(feat, axis=0, keepdims=True)
        var = jnp.mean((feat - mean) ** 2, axis=0, keepdims=True)
        xn = (feat - mean) * jax.lax.rsqrt(var + eps) * g_ref[...] + be_ref[...]

        # ---- fc1 -> dropout -> fc2 -> fc3 ----
        # TODO(synk): nn.Dropout applied as identity (inference semantics); training RNG mask not reproduced.
        h1 = jnp.dot(xn, w1_ref[...], preferred_element_type=jnp.float32) + b1_ref[...]
        h2 = jnp.dot(h1, w2_ref[...], preferred_element_type=jnp.float32) + b2_ref[...]
        o_ref[...] = jnp.dot(h2, w3_ref[...], preferred_element_type=jnp.float32) + b3_ref[...]

    return kernel, (Lc, Lp_mp, Lp_apM, Lp_apm, F)


def _feature_permutation(Cout, Lp_mp, Lp_apM, Lp_apm):
    """perm[j_kernel] = j_pytorch.

    PyTorch flattens the pooled (C, Lp) maps channel-major (feature = c*Lp + p);
    the kernel builds feat lane-dense / channel-last (feature = p*C + c).
    Applying this permutation to BN gamma/beta and the fc1 weight rows makes the
    two orderings mathematically identical (layout plumbing stays in the wrapper).
    """
    segs, off = [], 0
    for Lp in (Lp_mp, Lp_apM, Lp_mp, Lp_apm):       # x1_mp, x1_ap, x2_mp(=x1_mp), x2_ap
        segs.append(off + np.arange(Cout * Lp).reshape(Cout, Lp).T.reshape(-1))
        off += Cout * Lp
    return np.concatenate(segs)


def prepare_params(p, *, Cout, Lp_mp, Lp_apM, Lp_apm):
    """One-time param prep: im2col-flattened conv weight + lane-dense-permuted BN/fc1."""
    perm = _feature_permutation(Cout, Lp_mp, Lp_apM, Lp_apm)
    K, Cin = p["conv_w"].shape[2], p["conv_w"].shape[1]
    # (Cout, Cin, K) PyTorch layout -> (K*Cin, Cout) with row index k*Cin + c,
    # matching the lane order of the in-kernel im2col patches.
    w_flat = jnp.transpose(p["conv_w"], (2, 1, 0)).reshape(K * Cin, Cout)
    return dict(
        conv_w_flat=w_flat,
        conv_b=p["conv_b"].reshape(1, Cout),
        bn_g=p["bn_g"][perm][None, :],
        bn_b=p["bn_b"][perm][None, :],
        fc1_w=p["fc1_w"][perm, :],                  # (F, H1), rows permuted to kernel order
        fc1_b=p["fc1_b"].reshape(1, -1),
        fc2_w=p["fc2_w"], fc2_b=p["fc2_b"].reshape(1, -1),
        fc3_w=p["fc3_w"], fc3_b=p["fc3_b"].reshape(1, -1),
    )


def make_define_forward(B, Cin, L, Cout, K, H3, cfg):
    kernel, dims = make_fused_kernel(
        B, L, Cin, Cout, K,
        cfg["mp_major_k"], cfg["mp_major_s"],
        cfg["ap_major_k"], cfg["ap_major_s"],
        cfg["ap_minor_k"], cfg["ap_minor_s"])

    call = pl.pallas_call(
        kernel,
        out_shape=jax.ShapeDtypeStruct((B, H3), jnp.float32),
        in_specs=[VMEM_SPEC] * 12,
        out_specs=VMEM_SPEC,
    )

    def forward(x1_ncl, x2_ncl, kp):
        # Wrapper glue: PyTorch NCL -> NLC so channels ride the 128-lane dim.
        x1 = jnp.transpose(x1_ncl, (0, 2, 1))
        x2 = jnp.transpose(x2_ncl, (0, 2, 1))
        return call(x1, x2,
                    kp["conv_w_flat"], kp["conv_b"], kp["bn_g"], kp["bn_b"],
                    kp["fc1_w"], kp["fc1_b"], kp["fc2_w"], kp["fc2_b"],
                    kp["fc3_w"], kp["fc3_b"])

    return forward, dims


if __name__ == "__main__":
    # Small, consistent hyperparameters (same as the PyTorch module would imply).
    B, Cin, L = 2, 4, 16          # batch, conv in_channels, seqlen
    Cout, K = 8, 3                # conv out_channels, kernel_size
    cfg = dict(mp_major_k=2, mp_major_s=2,
               ap_major_k=2, ap_major_s=2,
               ap_minor_k=2, ap_minor_s=2)
    H1, H2, H3 = 32, 16, 4        # fc1/fc2/fc3 out_channels

    forward, (Lc, Lp_mp, Lp_apM, Lp_apm, F) = make_define_forward(B, Cin, L, Cout, K, H3, cfg)
    # Matches the module's bn_in_channels = floor(Lc / mp_major_k) * out_channels * 4.
    assert F == (Lc // cfg["mp_major_k"]) * Cout * 4 == 224

    key = jax.random.PRNGKey(0)
    ks = jax.random.split(key, 10)
    params_pt = {
        "conv_w": jax.random.normal(ks[0], (Cout, Cin, K), jnp.float32),   # weight.normal_(0,1)
        "conv_b": 0.1 * jax.random.normal(ks[1], (Cout,), jnp.float32),
        "bn_g": jnp.ones((F,), jnp.float32),                               # BatchNorm1d defaults
        "bn_b": jnp.zeros((F,), jnp.float32),
        "fc1_w": jax.random.normal(ks[2], (F, H1), jnp.float32) / jnp.sqrt(F * 1.0),
        "fc1_b": 0.1 * jax.random.normal(ks[3], (H1,), jnp.float32),
        "fc2_w": jax.random.normal(ks[4], (H1, H2), jnp.float32) / jnp.sqrt(H1 * 1.0),
        "fc2_b": 0.1 * jax.random.normal(ks[5], (H2,), jnp.float32),
        "fc3_w": jax.random.normal(ks[6], (H2, H3), jnp.float32) / jnp.sqrt(H2 * 1.0),
        "fc3_b": 0.1 * jax.random.normal(ks[7], (H3,), jnp.float32),
    }
    kparams = prepare_params(params_pt, Cout=Cout, Lp_mp=Lp_mp, Lp_apM=Lp_apM, Lp_apm=Lp_apm)

    x1 = jax.random.normal(ks[8], (B, Cin, L), jnp.float32)   # PyTorch NCL inputs
    x2 = jax.random.normal(ks[9], (B, Cin, L), jnp.float32)

    fwd = jax.jit(forward)
    out = fwd(x1, x2, kparams)
    jax.block_until_ready(out)
    assert out.shape == (B, H3) and out.dtype == jnp.float32
    print("KERNEL_OK")
</pallas_src>

<mosaic_0001>
module attributes {stable_mosaic.version = 11 : i64} {
  func.func @kernel(%arg0: memref<2x16x4xf32, #tpu.memory_space<vmem>>, %arg1: memref<2x16x4xf32, #tpu.memory_space<vmem>>, %arg2: memref<12x8xf32, #tpu.memory_space<vmem>>, %arg3: memref<1x8xf32, #tpu.memory_space<vmem>>, %arg4: memref<1x224xf32, #tpu.memory_space<vmem>>, %arg5: memref<1x224xf32, #tpu.memory_space<vmem>>, %arg6: memref<224x32xf32, #tpu.memory_space<vmem>>, %arg7: memref<1x32xf32, #tpu.memory_space<vmem>>, %arg8: memref<32x16xf32, #tpu.memory_space<vmem>>, %arg9: memref<1x16xf32, #tpu.memory_space<vmem>>, %arg10: memref<16x4xf32, #tpu.memory_space<vmem>>, %arg11: memref<1x4xf32, #tpu.memory_space<vmem>>, %arg12: memref<2x4xf32, #tpu.memory_space<vmem>>) attributes {dimension_semantics = [], scalar_prefetch = 0 : i64, scratch_operands = 0 : i64, tpu.core_type = #tpu.core_type<tc>} {
    %c0 = arith.constant 0 : index
    %c0_0 = arith.constant 0 : index
    %c0_1 = arith.constant 0 : index
    %0 = vector.load %arg0[%c0, %c0_0, %c0_1] : memref<2x16x4xf32, #tpu.memory_space<vmem>>, vector<2x16x4xf32>
    %c0_2 = arith.constant 0 : index
    %c0_3 = arith.constant 0 : index
    %c0_4 = arith.constant 0 : index
    %1 = vector.load %arg1[%c0_2, %c0_3, %c0_4] : memref<2x16x4xf32, #tpu.memory_space<vmem>>, vector<2x16x4xf32>
    %2 = vector.extract_strided_slice %0 {offsets = [0, 0, 0], sizes = [1, 16, 4], strides = [1, 1, 1]} : vector<2x16x4xf32> to vector<1x16x4xf32>
    %3 = vector.shape_cast %2 : vector<1x16x4xf32> to vector<16x4xf32>
    %4 = vector.extract_strided_slice %0 {offsets = [1, 0, 0], sizes = [1, 16, 4], strides = [1, 1, 1]} : vector<2x16x4xf32> to vector<1x16x4xf32>
    %5 = vector.shape_cast %4 : vector<1x16x4xf32> to vector<16x4xf32>
    %6 = vector.extract_strided_slice %1 {offsets = [0, 0, 0], sizes = [1, 16, 4], strides = [1, 1, 1]} : vector<2x16x4xf32> to vector<1x16x4xf32>
    %7 = vector.shape_cast %6 : vector<1x16x4xf32> to vector<16x4xf32>
    %8 = vector.extract_strided_slice %1 {offsets = [1, 0, 0], sizes = [1, 16, 4], strides = [1, 1, 1]} : vector<2x16x4xf32> to vector<1x16x4xf32>
    %9 = vector.shape_cast %8 : vector<1x16x4xf32> to vector<16x4xf32>
    %10 = vector.extract_strided_slice %3 {offsets = [0, 0], sizes = [14, 4], strides = [1, 1]} : vector<16x4xf32> to vector<14x4xf32>
    %11 = vector.extract_strided_slice %3 {offsets = [1, 0], sizes = [14, 4], strides = [1, 1]} : vector<16x4xf32> to vector<14x4xf32>
    %12 = vector.extract_strided_slice %3 {offsets = [2, 0], sizes = [14, 4], strides = [1, 1]} : vector<16x4xf32> to vector<14x4xf32>
    %13 = tpu.concatenate %10, %11, %12 in 1 : vector<14x4xf32>, vector<14x4xf32>, vector<14x4xf32> -> vector<14x12xf32>
    %14 = vector.extract_strided_slice %5 {offsets = [0, 0], sizes = [14, 4], strides = [1, 1]} : vector<16x4xf32> to vector<14x4xf32>
    %15 = vector.extract_strided_slice %5 {offsets = [1, 0], sizes = [14, 4], strides = [1, 1]} : vector<16x4xf32> to vector<14x4xf32>
    %16 = vector.extract_strided_slice %5 {offsets = [2, 0], sizes = [14, 4], strides = [1, 1]} : vector<16x4xf32> to vector<14x4xf32>
    %17 = tpu.concatenate %14, %15, %16 in 1 : vector<14x4xf32>, vector<14x4xf32>, vector<14x4xf32> -> vector<14x12xf32>
    %18 = vector.extract_strided_slice %7 {offsets = [0, 0], sizes = [14, 4], strides = [1, 1]} : vector<16x4xf32> to vector<14x4xf32>
    %19 = vector.extract_strided_slice %7 {offsets = [1, 0], sizes = [14, 4], strides = [1, 1]} : vector<16x4xf32> to vector<14x4xf32>
    %20 = vector.extract_strided_slice %7 {offsets = [2, 0], sizes = [14, 4], strides = [1, 1]} : vector<16x4xf32> to vector<14x4xf32>
    %21 = tpu.concatenate %18, %19, %20 in 1 : vector<14x4xf32>, vector<14x4xf32>, vector<14x4xf32> -> vector<14x12xf32>
    %22 = vector.extract_strided_slice %9 {offsets = [0, 0], sizes = [14, 4], strides = [1, 1]} : vector<16x4xf32> to vector<14x4xf32>
    %23 = vector.extract_strided_slice %9 {offsets = [1, 0], sizes = [14, 4], strides = [1, 1]} : vector<16x4xf32> to vector<14x4xf32>
    %24 = vector.extract_strided_slice %9 {offsets = [2, 0], sizes = [14, 4], strides = [1, 1]} : vector<16x4xf32> to vector<14x4xf32>
    %25 = tpu.concatenate %22, %23, %24 in 1 : vector<14x4xf32>, vector<14x4xf32>, vector<14x4xf32> -> vector<14x12xf32>
    %26 = tpu.concatenate %13, %17, %21, %25 in 0 : vector<14x12xf32>, vector<14x12xf32>, vector<14x12xf32>, vector<14x12xf32> -> vector<56x12xf32>
    %c0_5 = arith.constant 0 : index
    %c0_6 = arith.constant 0 : index
    %27 = vector.load %arg2[%c0_5, %c0_6] : memref<12x8xf32, #tpu.memory_space<vmem>>, vector<12x8xf32>
    %cst = arith.constant dense<0.000000e+00> : vector<56x8xf32>
    %28 = tpu.matmul %26, %27, %cst {dimension_numbers = #tpu.dot_dimension_numbers<[1], [0], [0], [1], [0, 0, 1, 1], [], []>} : vector<56x12xf32>, vector<12x8xf32>, vector<56x8xf32> -> vector<56x8xf32>
    %c0_7 = arith.constant 0 : index
    %c0_8 = arith.constant 0 : index
    %29 = vector.load %arg3[%c0_7, %c0_8] : memref<1x8xf32, #tpu.memory_space<vmem>>, vector<1x8xf32>
    %30 = vector.broadcast %29 : vector<1x8xf32> to vector<56x8xf32>
    %31 = arith.addf %28, %30 : vector<56x8xf32>
    %cst_9 = arith.constant 0.000000e+00 : f32
    %32 = vector.broadcast %cst_9 : f32 to vector<56x8xf32>
    %33 = arith.maximumf %31, %32 : vector<56x8xf32>
    %34 = vector.extract_strided_slice %33 {offsets = [0, 0], sizes = [14, 8], strides = [1, 1]} : vector<56x8xf32> to vector<14x8xf32>
    %35 = vector.extract_strided_slice %33 {offsets = [28, 0], sizes = [14, 8], strides = [1, 1]} : vector<56x8xf32> to vector<14x8xf32>
    %36 = vector.extract_strided_slice %34 {offsets = [0, 0], sizes = [13, 8], strides = [1, 1]} : vector<14x8xf32> to vector<13x8xf32>
    %37 = vector.extract_strided_slice %34 {offsets = [1, 0], sizes = [13, 8], strides = [1, 1]} : vector<14x8xf32> to vector<13x8xf32>
    %38 = arith.maximumf %36, %37 : vector<13x8xf32>
    %39 = vector.extract_strided_slice %38 {offsets = [0, 0], sizes = [1, 8], strides = [1, 1]} : vector<13x8xf32> to vector<1x8xf32>
    %40 = vector.extract_strided_slice %38 {offsets = [2, 0], sizes = [1, 8], strides = [1, 1]} : vector<13x8xf32> to vector<1x8xf32>
    %41 = vector.extract_strided_slice %38 {offsets = [4, 0], sizes = [1, 8], strides = [1, 1]} : vector<13x8xf32> to vector<1x8xf32>
    %42 = vector.extract_strided_slice %38 {offsets = [6, 0], sizes = [1, 8], strides = [1, 1]} : vector<13x8xf32> to vector<1x8xf32>
    %43 = vector.extract_strided_slice %38 {offsets = [8, 0], sizes = [1, 8], strides = [1, 1]} : vector<13x8xf32> to vector<1x8xf32>
    %44 = vector.extract_strided_slice %38 {offsets = [10, 0], sizes = [1, 8], strides = [1, 1]} : vector<13x8xf32> to vector<1x8xf32>
    %45 = vector.extract_strided_slice %38 {offsets = [12, 0], sizes = [1, 8], strides = [1, 1]} : vector<13x8xf32> to vector<1x8xf32>
    %46 = tpu.concatenate %39, %40, %41, %42, %43, %44, %45 in 1 : vector<1x8xf32>, vector<1x8xf32>, vector<1x8xf32>, vector<1x8xf32>, vector<1x8xf32>, vector<1x8xf32>, vector<1x8xf32> -> vector<1x56xf32>
    %47 = vector.extract_strided_slice %34 {offsets = [0, 0], sizes = [13, 8], strides = [1, 1]} : vector<14x8xf32> to vector<13x8xf32>
    %48 = vector.extract_strided_slice %34 {offsets = [1, 0], sizes = [13, 8], strides = [1, 1]} : vector<14x8xf32> to vector<13x8xf32>
    %49 = arith.addf %47, %48 : vector<13x8xf32>
    %cst_10 = arith.constant 5.000000e-01 : f32
    %50 = vector.broadcast %cst_10 : f32 to vector<13x8xf32>
    %51 = arith.mulf %49, %50 : vector<13x8xf32>
    %52 = vector.extract_strided_slice %51 {offsets = [0, 0], sizes = [1, 8], strides = [1, 1]} : vector<13x8xf32> to vector<1x8xf32>
    %53 = vector.extract_strided_slice %51 {offsets = [2, 0], sizes = [1, 8], strides = [1, 1]} : vector<13x8xf32> to vector<1x8xf32>
    %54 = vector.extract_strided_slice %51 {offsets = [4, 0], sizes = [1, 8], strides = [1, 1]} : vector<13x8xf32> to vector<1x8xf32>
    %55 = vector.extract_strided_slice %51 {offsets = [6, 0], sizes = [1, 8], strides = [1, 1]} : vector<13x8xf32> to vector<1x8xf32>
    %56 = vector.extract_strided_slice %51 {offsets = [8, 0], sizes = [1, 8], strides = [1, 1]} : vector<13x8xf32> to vector<1x8xf32>
    %57 = vector.extract_strided_slice %51 {offsets = [10, 0], sizes = [1, 8], strides = [1, 1]} : vector<13x8xf32> to vector<1x8xf32>
    %58 = vector.extract_strided_slice %51 {offsets = [12, 0], sizes = [1, 8], strides = [1, 1]} : vector<13x8xf32> to vector<1x8xf32>
    %59 = tpu.concatenate %52, %53, %54, %55, %56, %57, %58 in 1 : vector<1x8xf32>, vector<1x8xf32>, vector<1x8xf32>, vector<1x8xf32>, vector<1x8xf32>, vector<1x8xf32>, vector<1x8xf32> -> vector<1x56xf32>
    %60 = vector.extract_strided_slice %35 {offsets = [0, 0], sizes = [13, 8], strides = [1, 1]} : vector<14x8xf32> to vector<13x8xf32>
    %61 = vector.extract_strided_slice %35 {offsets = [1, 0], sizes = [13, 8], strides = [1, 1]} : vector<14x8xf32> to vector<13x8xf32>
    %62 = arith.addf %60, %61 : vector<13x8xf32>
    %cst_11 = arith.constant 5.000000e-01 : f32
    %63 = vector.broadcast %cst_11 : f32 to vector<13x8xf32>
    %64 = arith.mulf %62, %63 : vector<13x8xf32>
    %65 = vector.extract_strided_slice %64 {offsets = [0, 0], sizes = [1, 8], strides = [1, 1]} : vector<13x8xf32> to vector<1x8xf32>
    %66 = vector.extract_strided_slice %64 {offsets = [2, 0], sizes = [1, 8], strides = [1, 1]} : vector<13x8xf32> to vector<1x8xf32>
    %67 = vector.extract_strided_slice %64 {offsets = [4, 0], sizes = [1, 8], strides = [1, 1]} : vector<13x8xf32> to vector<1x8xf32>
    %68 = vector.extract_strided_slice %64 {offsets = [6, 0], sizes = [1, 8], strides = [1, 1]} : vector<13x8xf32> to vector<1x8xf32>
    %69 = vector.extract_strided_slice %64 {offsets = [8, 0], sizes = [1, 8], strides = [1, 1]} : vector<13x8xf32> to vector<1x8xf32>
    %70 = vector.extract_strided_slice %64 {offsets = [10, 0], sizes = [1, 8], strides = [1, 1]} : vector<13x8xf32> to vector<1x8xf32>
    %71 = vector.extract_strided_slice %64 {offsets = [12, 0], sizes = [1, 8], strides = [1, 1]} : vector<13x8xf32> to vector<1x8xf32>
    %72 = tpu.concatenate %65, %66, %67, %68, %69, %70, %71 in 1 : vector<1x8xf32>, vector<1x8xf32>, vector<1x8xf32>, vector<1x8xf32>, vector<1x8xf32>, vector<1x8xf32>, vector<1x8xf32> -> vector<1x56xf32>
    %73 = tpu.concatenate %46, %59, %46, %72 in 1 : vector<1x56xf32>, vector<1x56xf32>, vector<1x56xf32>, vector<1x56xf32> -> vector<1x224xf32>
    %74 = vector.extract_strided_slice %33 {offsets = [14, 0], sizes = [14, 8], strides = [1, 1]} : vector<56x8xf32> to vector<14x8xf32>
    %75 = vector.extract_strided_slice %33 {offsets = [42, 0], sizes = [14, 8], strides = [1, 1]} : vector<56x8xf32> to vector<14x8xf32>
    %76 = vector.extract_strided_slice %74 {offsets = [0, 0], sizes = [13, 8], strides = [1, 1]} : vector<14x8xf32> to vector<13x8xf32>
    %77 = vector.extract_strided_slice %74 {offsets = [1, 0], sizes = [13, 8], strides = [1, 1]} : vector<14x8xf32> to vector<13x8xf32>
    %78 = arith.maximumf %76, %77 : vector<13x8xf32>
    %79 = vector.extract_strided_slice %78 {offsets = [0, 0], sizes = [1, 8], strides = [1, 1]} : vector<13x8xf32> to vector<1x8xf32>
    %80 = vector.extract_strided_slice %78 {offsets = [2, 0], sizes = [1, 8], strides = [1, 1]} : vector<13x8xf32> to vector<1x8xf32>
    %81 = vector.extract_strided_slice %78 {offsets = [4, 0], sizes = [1, 8], strides = [1, 1]} : vector<13x8xf32> to vector<1x8xf32>
    %82 = vector.extract_strided_slice %78 {offsets = [6, 0], sizes = [1, 8], strides = [1, 1]} : vector<13x8xf32> to vector<1x8xf32>
    %83 = vector.extract_strided_slice %78 {offsets = [8, 0], sizes = [1, 8], strides = [1, 1]} : vector<13x8xf32> to vector<1x8xf32>
    %84 = vector.extract_strided_slice %78 {offsets = [10, 0], sizes = [1, 8], strides = [1, 1]} : vector<13x8xf32> to vector<1x8xf32>
    %85 = vector.extract_strided_slice %78 {offsets = [12, 0], sizes = [1, 8], strides = [1, 1]} : vector<13x8xf32> to vector<1x8xf32>
    %86 = tpu.concatenate %79, %80, %81, %82, %83, %84, %85 in 1 : vector<1x8xf32>, vector<1x8xf32>, vector<1x8xf32>, vector<1x8xf32>, vector<1x8xf32>, vector<1x8xf32>, vector<1x8xf32> -> vector<1x56xf32>
    %87 = vector.extract_strided_slice %74 {offsets = [0, 0], sizes = [13, 8], strides = [1, 1]} : vector<14x8xf32> to vector<13x8xf32>
    %88 = vector.extract_strided_slice %74 {offsets = [1, 0], sizes = [13, 8], strides = [1, 1]} : vector<14x8xf32> to vector<13x8xf32>
    %89 = arith.addf %87, %88 : vector<13x8xf32>
    %cst_12 = arith.constant 5.000000e-01 : f32
    %90 = vector.broadcast %cst_12 : f32 to vector<13x8xf32>
    %91 = arith.mulf %89, %90 : vector<13x8xf32>
    %92 = vector.extract_strided_slice %91 {offsets = [0, 0], sizes = [1, 8], strides = [1, 1]} : vector<13x8xf32> to vector<1x8xf32>
    %93 = vector.extract_strided_slice %91 {offsets = [2, 0], sizes = [1, 8], strides = [1, 1]} : vector<13x8xf32> to vector<1x8xf32>
    %94 = vector.extract_strided_slice %91 {offsets = [4, 0], sizes = [1, 8], strides = [1, 1]} : vector<13x8xf32> to vector<1x8xf32>
    %95 = vector.extract_strided_slice %91 {offsets = [6, 0], sizes = [1, 8], strides = [1, 1]} : vector<13x8xf32> to vector<1x8xf32>
    %96 = vector.extract_strided_slice %91 {offsets = [8, 0], sizes = [1, 8], strides = [1, 1]} : vector<13x8xf32> to vector<1x8xf32>
    %97 = vector.extract_strided_slice %91 {offsets = [10, 0], sizes = [1, 8], strides = [1, 1]} : vector<13x8xf32> to vector<1x8xf32>
    %98 = vector.extract_strided_slice %91 {offsets = [12, 0], sizes = [1, 8], strides = [1, 1]} : vector<13x8xf32> to vector<1x8xf32>
    %99 = tpu.concatenate %92, %93, %94, %95, %96, %97, %98 in 1 : vector<1x8xf32>, vector<1x8xf32>, vector<1x8xf32>, vector<1x8xf32>, vector<1x8xf32>, vector<1x8xf32>, vector<1x8xf32> -> vector<1x56xf32>
    %100 = vector.extract_strided_slice %75 {offsets = [0, 0], sizes = [13, 8], strides = [1, 1]} : vector<14x8xf32> to vector<13x8xf32>
    %101 = vector.extract_strided_slice %75 {offsets = [1, 0], sizes = [13, 8], strides = [1, 1]} : vector<14x8xf32> to vector<13x8xf32>
    %102 = arith.addf %100, %101 : vector<13x8xf32>
    %cst_13 = arith.constant 5.000000e-01 : f32
    %103 = vector.broadcast %cst_13 : f32 to vector<13x8xf32>
    %104 = arith.mulf %102, %103 : vector<13x8xf32>
    %105 = vector.extract_strided_slice %104 {offsets = [0, 0], sizes = [1, 8], strides = [1, 1]} : vector<13x8xf32> to vector<1x8xf32>
    %106 = vector.extract_strided_slice %104 {offsets = [2, 0], sizes = [1, 8], strides = [1, 1]} : vector<13x8xf32> to vector<1x8xf32>
    %107 = vector.extract_strided_slice %104 {offsets = [4, 0], sizes = [1, 8], strides = [1, 1]} : vector<13x8xf32> to vector<1x8xf32>
    %108 = vector.extract_strided_slice %104 {offsets = [6, 0], sizes = [1, 8], strides = [1, 1]} : vector<13x8xf32> to vector<1x8xf32>
    %109 = vector.extract_strided_slice %104 {offsets = [8, 0], sizes = [1, 8], strides = [1, 1]} : vector<13x8xf32> to vector<1x8xf32>
    %110 = vector.extract_strided_slice %104 {offsets = [10, 0], sizes = [1, 8], strides = [1, 1]} : vector<13x8xf32> to vector<1x8xf32>
    %111 = vector.extract_strided_slice %104 {offsets = [12, 0], sizes = [1, 8], strides = [1, 1]} : vector<13x8xf32> to vector<1x8xf32>
    %112 = tpu.concatenate %105, %106, %107, %108, %109, %110, %111 in 1 : vector<1x8xf32>, vector<1x8xf32>, vector<1x8xf32>, vector<1x8xf32>, vector<1x8xf32>, vector<1x8xf32>, vector<1x8xf32> -> vector<1x56xf32>
    %113 = tpu.concatenate %86, %99, %86, %112 in 1 : vector<1x56xf32>, vector<1x56xf32>, vector<1x56xf32>, vector<1x56xf32> -> vector<1x224xf32>
    %114 = tpu.concatenate %73, %113 in 0 : vector<1x224xf32>, vector<1x224xf32> -> vector<2x224xf32>
    %cst_14 = arith.constant dense<0.000000e+00> : vector<224xf32>
    %115 = vector.multi_reduction <add>, %114, %cst_14 [0] : vector<2x224xf32> to vector<224xf32>
    %116 = vector.shape_cast %115 : vector<224xf32> to vector<1x224xf32>
    %cst_15 = arith.constant 2.000000e+00 : f32
    %117 = vector.broadcast %cst_15 : f32 to vector<1x224xf32>
    %118 = arith.divf %116, %117 : vector<1x224xf32>
    %119 = vector.broadcast %118 : vector<1x224xf32> to vector<2x224xf32>
    %120 = arith.subf %114, %119 : vector<2x224xf32>
    %121 = arith.mulf %120, %120 : vector<2x224xf32>
    %cst_16 = arith.constant dense<0.000000e+00> : vector<224xf32>
    %122 = vector.multi_reduction <add>, %121, %cst_16 [0] : vector<2x224xf32> to vector<224xf32>
    %123 = vector.shape_cast %122 : vector<224xf32> to vector<1x224xf32>
    %cst_17 = arith.constant 2.000000e+00 : f32
    %124 = vector.broadcast %cst_17 : f32 to vector<1x224xf32>
    %125 = arith.divf %123, %124 : vector<1x224xf32>
    %126 = vector.broadcast %118 : vector<1x224xf32> to vector<2x224xf32>
    %127 = arith.subf %114, %126 : vector<2x224xf32>
    %cst_18 = arith.constant 9.99999974E-6 : f32
    %128 = vector.broadcast %cst_18 : f32 to vector<1x224xf32>
    %129 = arith.addf %125, %128 : vector<1x224xf32>
    %130 = math.rsqrt %129 : vector<1x224xf32>
    %131 = vector.broadcast %130 : vector<1x224xf32> to vector<2x224xf32>
    %132 = arith.mulf %127, %131 : vector<2x224xf32>
    %c0_19 = arith.constant 0 : index
    %c0_20 = arith.constant 0 : index
    %133 = vector.load %arg4[%c0_19, %c0_20] : memref<1x224xf32, #tpu.memory_space<vmem>>, vector<1x224xf32>
    %134 = vector.broadcast %133 : vector<1x224xf32> to vector<2x224xf32>
    %135 = arith.mulf %132, %134 : vector<2x224xf32>
    %c0_21 = arith.constant 0 : index
    %c0_22 = arith.constant 0 : index
    %136 = vector.load %arg5[%c0_21, %c0_22] : memref<1x224xf32, #tpu.memory_space<vmem>>, vector<1x224xf32>
    %137 = vector.broadcast %136 : vector<1x224xf32> to vector<2x224xf32>
    %138 = arith.addf %135, %137 : vector<2x224xf32>
    %c0_23 = arith.constant 0 : index
    %c0_24 = arith.constant 0 : index
    %139 = vector.load %arg6[%c0_23, %c0_24] : memref<224x32xf32, #tpu.memory_space<vmem>>, vector<224x32xf32>
    %cst_25 = arith.constant dense<0.000000e+00> : vector<2x32xf32>
    %140 = tpu.matmul %138, %139, %cst_25 {dimension_numbers = #tpu.dot_dimension_numbers<[1], [0], [0], [1], [0, 0, 1, 1], [], []>} : vector<2x224xf32>, vector<224x32xf32>, vector<2x32xf32> -> vector<2x32xf32>
    %c0_26 = arith.constant 0 : index
    %c0_27 = arith.constant 0 : index
    %141 = vector.load %arg7[%c0_26, %c0_27] : memref<1x32xf32, #tpu.memory_space<vmem>>, vector<1x32xf32>
    %142 = vector.broadcast %141 : vector<1x32xf32> to vector<2x32xf32>
    %143 = arith.addf %140, %142 : vector<2x32xf32>
    %c0_28 = arith.constant 0 : index
    %c0_29 = arith.constant 0 : index
    %144 = vector.load %arg8[%c0_28, %c0_29] : memref<32x16xf32, #tpu.memory_space<vmem>>, vector<32x16xf32>
    %cst_30 = arith.constant dense<0.000000e+00> : vector<2x16xf32>
    %145 = tpu.matmul %143, %144, %cst_30 {dimension_numbers = #tpu.dot_dimension_numbers<[1], [0], [0], [1], [0, 0, 1, 1], [], []>} : vector<2x32xf32>, vector<32x16xf32>, vector<2x16xf32> -> vector<2x16xf32>
    %c0_31 = arith.constant 0 : index
    %c0_32 = arith.constant 0 : index
    %146 = vector.load %arg9[%c0_31, %c0_32] : memref<1x16xf32, #tpu.memory_space<vmem>>, vector<1x16xf32>
    %147 = vector.broadcast %146 : vector<1x16xf32> to vector<2x16xf32>
    %148 = arith.addf %145, %147 : vector<2x16xf32>
    %c0_33 = arith.constant 0 : index
    %c0_34 = arith.constant 0 : index
    %149 = vector.load %arg10[%c0_33, %c0_34] : memref<16x4xf32, #tpu.memory_space<vmem>>, vector<16x4xf32>
    %cst_35 = arith.constant dense<0.000000e+00> : vector<2x4xf32>
    %150 = tpu.matmul %148, %149, %cst_35 {dimension_numbers = #tpu.dot_dimension_numbers<[1], [0], [0], [1], [0, 0, 1, 1], [], []>} : vector<2x16xf32>, vector<16x4xf32>, vector<2x4xf32> -> vector<2x4xf32>
    %c0_36 = arith.constant 0 : index
    %c0_37 = arith.constant 0 : index
    %151 = vector.load %arg11[%c0_36, %c0_37] : memref<1x4xf32, #tpu.memory_space<vmem>>, vector<1x4xf32>
    %152 = vector.broadcast %151 : vector<1x4xf32> to vector<2x4xf32>
    %153 = arith.addf %150, %152 : vector<2x4xf32>
    %c0_38 = arith.constant 0 : index
    %c0_39 = arith.constant 0 : index
    %154 = vector.load %arg12[%c0_38, %c0_39] : memref<2x4xf32, #tpu.memory_space<vmem>>, vector<2x4xf32>
    tpu.vector_store %arg12[%c0_38, %c0_39], %153 {strides = array<i32>} : memref<2x4xf32, #tpu.memory_space<vmem>>, vector<2x4xf32>,
    return
  }
}

</mosaic_0001>

<llo_original>
// kernel: forward.1
$region0: #{forward.1}
  #allocation0 [shape = 'u32[]', space=smem, size = 0x4, offset = 0x4, fixed_abs, tag = 'smem constant byte address 0x4 - core index']
  #allocation1 [shape = 'u32[72,128]{1,0:T(1,128)}', space=vmem, size = 0x9000, scoped, tag = 'internal scratch']
  %s0 = inlined_call_operand.vmem [shape: f32[2,16,4], index: 0, kind: input, shape index: {}]
  %s1 = inlined_call_operand.vmem [shape: f32[2,16,4], index: 1, kind: input, shape index: {}]
  %s2 = inlined_call_operand.vmem [shape: f32[12,8], index: 2, kind: input, shape index: {}]
  %s3 = inlined_call_operand.vmem [shape: f32[1,8], index: 3, kind: input, shape index: {}]
  %s4 = inlined_call_operand.vmem [shape: f32[1,224], index: 4, kind: input, shape index: {}]
  %s5 = inlined_call_operand.vmem [shape: f32[1,224], index: 5, kind: input, shape index: {}]
  %s6 = inlined_call_operand.vmem [shape: f32[224,32], index: 6, kind: input, shape index: {}]
  %s7 = inlined_call_operand.vmem [shape: f32[1,32], index: 7, kind: input, shape index: {}]
  %s8 = inlined_call_operand.vmem [shape: f32[32,16], index: 8, kind: input, shape index: {}]
  %s9 = inlined_call_operand.vmem [shape: f32[1,16], index: 9, kind: input, shape index: {}]
  %s10 = inlined_call_operand.vmem [shape: f32[16,4], index: 10, kind: input, shape index: {}]
  %s11 = inlined_call_operand.vmem [shape: f32[1,4], index: 11, kind: input, shape index: {}]
  %s12 = inlined_call_operand.hbm [shape: f32[2,4], index: 12, kind: output, shape index: {}]
  %s13 = sld [smem:[#allocation0]]
  $region58: #{forward.1} parent=0
    _
  %s15 = ssub.s32 1, %s13
  %s16 = scalar_select 0, %s15, %s13
  $region1: #{forward.1} parent=0
    #allocation2 [shape = 'u8[1024]{0}', space=vmem, size = 0x400, scoped, tag = 'output window, operand 0, single buffered']
    #allocation3 [shape = 's32[1]{0}', space=sflag, size = 0x4, scoped, tag = 'scoped memory for forward.1']
    %17 = vsyncpa [#allocation3], 0
    // Predicated region
    $region2: #{forward.1} parent=1 // pred_check
      _
    $region3: #{forward.1} parent=1 // pred_check_branch
      %19 = sbr.rel (0) target = $region5
    $region4: #{forward.1} parent=1 // pred_region
      _
    $region5: #{forward.1} parent=1 // pred_fallthru
      _
    // Predicated region
    $region6: #{forward.1} parent=1 // pred_check
      _
    $region7: #{forward.1} parent=1 // pred_check_branch
      %21 = sbr.rel (0) target = $region9
    $region8: #{forward.1} parent=1 // pred_region
      _
    $region9: #{forward.1} parent=1 // pred_fallthru
      _
    // Predicated region
    $region10: #{forward.1} parent=1 // pred_check
      _
    $region11: #{forward.1} parent=1 // pred_check_branch
      %23 = sbr.rel (0) target = $region13
    $region12: #{forward.1} parent=1 // pred_region
      _
    $region13: #{forward.1} parent=1 // pred_fallthru
      _
    // Predicated region
    $region14: #{forward.1} parent=1 // pred_check
      _
    $region15: #{forward.1} parent=1 // pred_check_branch
      %25 = sbr.rel (0) target = $region17
    $region16: #{forward.1} parent=1 // pred_region
      _
    $region17: #{forward.1} parent=1 // pred_fallthru
      _
    // Predicated region
    $region18: #{forward.1} parent=1 // pred_check
      _
    $region19: #{forward.1} parent=1 // pred_check_branch
      %27 = sbr.rel (0) target = $region21
    $region20: #{forward.1} parent=1 // pred_region
      _
    $region21: #{forward.1} parent=1 // pred_fallthru
      _
    // Predicated region
    $region22: #{forward.1} parent=1 // pred_check
      _
    $region23: #{forward.1} parent=1 // pred_check_branch
      %29 = sbr.rel (0) target = $region25
    $region24: #{forward.1} parent=1 // pred_region
      _
    $region25: #{forward.1} parent=1 // pred_fallthru
      _
    // Predicated region
    $region26: #{forward.1} parent=1 // pred_check
      _
    $region27: #{forward.1} parent=1 // pred_check_branch
      %31 = sbr.rel (0) target = $region29
    $region28: #{forward.1} parent=1 // pred_region
      _
    $region29: #{forward.1} parent=1 // pred_fallthru
      _
    // Predicated region
    $region30: #{forward.1} parent=1 // pred_check
      _
    $region31: #{forward.1} parent=1 // pred_check_branch
      %33 = sbr.rel (0) target = $region33
    $region32: #{forward.1} parent=1 // pred_region
      _
    $region33: #{forward.1} parent=1 // pred_fallthru
      _
    // Predicated region
    $region34: #{forward.1} parent=1 // pred_check
      _
    $region35: #{forward.1} parent=1 // pred_check_branch
      %35 = sbr.rel (0) target = $region37
    $region36: #{forward.1} parent=1 // pred_region
      _
    $region37: #{forward.1} parent=1 // pred_fallthru
      _
    // Predicated region
    $region38: #{forward.1} parent=1 // pred_check
      _
    $region39: #{forward.1} parent=1 // pred_check_branch
      %37 = sbr.rel (0) target = $region41
    $region40: #{forward.1} parent=1 // pred_region
      _
    $region41: #{forward.1} parent=1 // pred_fallthru
      _
    // Predicated region
    $region42: #{forward.1} parent=1 // pred_check
      _
    $region43: #{forward.1} parent=1 // pred_check_branch
      %39 = sbr.rel (0) target = $region45
    $region44: #{forward.1} parent=1 // pred_region
      _
    $region45: #{forward.1} parent=1 // pred_fallthru
      _
    // Predicated region
    $region46: #{forward.1} parent=1 // pred_check
      _
    $region47: #{forward.1} parent=1 // pred_check_branch
      %41 = sbr.rel (0) target = $region49
    $region48: #{forward.1} parent=1 // pred_region
      _
    $region49: #{forward.1} parent=1 // pred_fallthru
      _
    %v42 = vld [vmem:[%s0] sm:$0xff]
    %v43 = vld [vmem:[%s0 + $0x8] sm:$0xff]
    %v44 = vld [vmem:[%s0 + $0x10] sm:$0xff]
    %v45 = vld [vmem:[%s0 + $0x18] sm:$0xff]
    %v46 = vld [vmem:[%s1] sm:$0xff]
    %v47 = vld [vmem:[%s1 + $0x8] sm:$0xff]
    %v48 = vld [vmem:[%s1 + $0x10] sm:$0xff]
    %v49 = vld [vmem:[%s1 + $0x18] sm:$0xff]
    %vm52 = vcmask 1046528
    %v53 = vrot.slane %v42, 1
    %v54 = vrot.slane %v43, 1
    %v55 = vsel %vm52, %v53, %v54
    %56 = vrot.lane.b32.xlu0 %v55, 4
    %v57 = vpop.permute.xlu0 %56
    %58 = vrot.lane.b32.xlu0 %v54, 4
    %v59 = vpop.permute.xlu0 %58
    %vm62 = vcmask 1045504
    %v63 = vrot.slane %v42, 2
    %v64 = vrot.slane %v43, 2
    %v65 = vsel %vm62, %v63, %v64
    %66 = vrot.lane.b32.xlu0 %v65, 8
    %v67 = vpop.permute.xlu0 %66
    %68 = vrot.lane.b32.xlu0 %v64, 8
    %v69 = vpop.permute.xlu0 %68
    %vm72 = vcmask 31744
    %v73 = vsel %vm72, %v42, %v57
    %v74 = vsel %vm72, %v43, %v59
    %vm75 = vcmask 64512
    %v76 = vsel %vm75, %v73, %v67
    %v77 = vsel %vm75, %v74, %v69
    %v80 = vrot.slane %v44, 1
    %v81 = vrot.slane %v45, 1
    %v82 = vsel %vm52, %v80, %v81
    %83 = vrot.lane.b32.xlu0 %v82, 4
    %v84 = vpop.permute.xlu0 %83
    %85 = vrot.lane.b32.xlu0 %v81, 4
    %v86 = vpop.permute.xlu0 %85
    %v89 = vrot.slane %v44, 2
    %v90 = vrot.slane %v45, 2
    %v91 = vsel %vm62, %v89, %v90
    %92 = vrot.lane.b32.xlu0 %v91, 8
    %v93 = vpop.permute.xlu0 %92
    %94 = vrot.lane.b32.xlu0 %v90, 8
    %v95 = vpop.permute.xlu0 %94
    %v98 = vsel %vm72, %v44, %v84
    %v99 = vsel %vm72, %v45, %v86
    %v100 = vsel %vm75, %v98, %v93
    %v101 = vsel %vm75, %v99, %v95
    %v104 = vrot.slane %v46, 1
    %v105 = vrot.slane %v47, 1
    %v106 = vsel %vm52, %v104, %v105
    %107 = vrot.lane.b32.xlu0 %v106, 4
    %v108 = vpop.permute.xlu0 %107
    %109 = vrot.lane.b32.xlu0 %v105, 4
    %v110 = vpop.permute.xlu0 %109
    %v113 = vrot.slane %v46, 2
    %v114 = vrot.slane %v47, 2
    %v115 = vsel %vm62, %v113, %v114
    %116 = vrot.lane.b32.xlu0 %v115, 8
    %v117 = vpop.permute.xlu0 %116
    %118 = vrot.lane.b32.xlu0 %v114, 8
    %v119 = vpop.permute.xlu0 %118
    %v122 = vsel %vm72, %v46, %v108
    %v123 = vsel %vm72, %v47, %v110
    %v124 = vsel %vm75, %v122, %v117
    %v125 = vsel %vm75, %v123, %v119
    %v128 = vrot.slane %v48, 1
    %v129 = vrot.slane %v49, 1
    %v130 = vsel %vm52, %v128, %v129
    %131 = vrot.lane.b32.xlu0 %v130, 4
    %v132 = vpop.permute.xlu0 %131
    %133 = vrot.lane.b32.xlu0 %v129, 4
    %v134 = vpop.permute.xlu0 %133
    %v137 = vrot.slane %v48, 2
    %v138 = vrot.slane %v49, 2
    %v139 = vsel %vm62, %v137, %v138
    %140 = vrot.lane.b32.xlu0 %v139, 8
    %v141 = vpop.permute.xlu0 %140
    %142 = vrot.lane.b32.xlu0 %v138, 8
    %v143 = vpop.permute.xlu0 %142
    %v146 = vsel %vm72, %v48, %v132
    %v147 = vsel %vm72, %v49, %v134
    %v148 = vsel %vm75, %v146, %v141
    %v149 = vsel %vm75, %v147, %v143
    %v152 = vrot.slane %v100, 2
    %v153 = vrot.slane %v101, 2
    %v154 = vsel %vm62, %v152, %v153
    %vm159 = vcmask 1043456
    %v160 = vrot.slane %v124, 4
    %v161 = vrot.slane %v125, 4
    %v162 = vsel %vm159, %v160, %v161
    %vm167 = vcmask 1041408
    %v168 = vrot.slane %v148, 6
    %v169 = vrot.slane %v149, 6
    %v170 = vsel %vm167, %v168, %v169
    %v172 = vsel %vm62, %v77, %v152
    %v173 = vsel %vm159, %v153, %v160
    %v174 = vsel %vm167, %v161, %v168
    %v175 = vld [vmem:[%s2] sm:$0xff]
    %v176 = vld [vmem:[%s2 + $0x8] sm:$0xf]
    %v177 = vld [vmem:[%s3] sm:$0x1]
    %v179 = vperm.slane %v177, 0
    %vm181 = vcmask 97280
    %v183 = vsel %vm181, %v76, 0
    %v186 = vsel %vm181, %v172, 0
    %v188 = vsel %vm181, %v154, 0
    %v191 = vsel %vm181, %v173, 0
    %v193 = vsel %vm181, %v162, 0
    %v196 = vsel %vm181, %v174, 0
    %v198 = vsel %vm181, %v170, 0
    %v201 = vsel %vm159, %v176, 0
    %203 = vmatpush.msra.mxu0 0.0
    %204 = vmatpush.msra.mxu0 0.0
    %205 = vmatpush.msra.mxu0 0.0
    %206 = vmatpush.msra.mxu0 0.0
    %207 = vmatpush.msra.mxu0 0.0
    %208 = vmatpush.msra.mxu0 0.0
    %209 = vmatpush.msra.mxu0 0.0
    %210 = vmatpush.msra.mxu0 0.0
    %211 = vmatpush.msra.mxu0 0.0
    %212 = vmatpush.msra.mxu0 0.0
    %213 = vmatpush.msra.mxu0 0.0
    %214 = vmatpush.msra.mxu0 0.0
    %215 = vmatpush.msra.mxu0 0.0
    %216 = vmatpush.msra.mxu0 0.0
    %217 = vmatpush.msra.mxu0 %v201
    %218 = vmatpush.msra.mxu0 %v175
    %219 = vmatmul.f32.gmra.mxu0 %v183
    %v220 = vpop.f32.mrf.mxu0
    %v221 = vadd.f32 %v179, %v220
    %222 = vmatmul.f32.gmra.mxu0 %v186
    %v223 = vpop.f32.mrf.mxu0
    %v224 = vadd.f32 %v179, %v223
    %225 = vmatmul.f32.gmra.mxu0 %v188
    %v226 = vpop.f32.mrf.mxu0
    %v227 = vadd.f32 %v179, %v226
    %228 = vmatmul.f32.gmra.mxu0 %v191
    %v229 = vpop.f32.mrf.mxu0
    %v230 = vadd.f32 %v179, %v229
    %231 = vmatmul.f32.gmra.mxu0 %v193
    %v232 = vpop.f32.mrf.mxu0
    %v233 = vadd.f32 %v179, %v232
    %234 = vmatmul.f32.gmra.mxu0 %v196
    %v235 = vpop.f32.mrf.mxu0
    %v236 = vadd.f32 %v179, %v235
    %237 = vmatmul.f32.gmra.mxu0 %v198
    %v238 = vpop.f32.mrf.mxu0
    %v239 = vadd.f32 %v179, %v238
    %240 = vdwg.mxu0
    %v241 = vmax.f32 %v221, 0.0
    %v242 = vmax.f32 %v224, 0.0
    %v243 = vmax.f32 %v227, 0.0
    %v244 = vmax.f32 %v230, 0.0
    %v245 = vmax.f32 %v233, 0.0
    %v246 = vmax.f32 %v236, 0.0
    %v247 = vmax.f32 %v239, 0.0
    %v250 = vrot.slane %v241, 1
    %v251 = vrot.slane %v242, 1
    %v252 = vsel %vm52, %v250, %v251
    %v255 = vmax.f32 %v241, %v252
    %v256 = vmax.f32 %v242, %v251
    %v258 = vrot.slane %v255, 2
    %259 = vrot.lane.b32.xlu0 %v258, 8
    %v260 = vpop.permute.xlu0 %259
    %v262 = vrot.slane %v255, 4
    %263 = vrot.lane.b32.xlu0 %v262, 16
    %v264 = vpop.permute.xlu0 %263
    %v266 = vrot.slane %v255, 6
    %267 = vrot.lane.b32.xlu0 %v266, 24
    %v268 = vpop.permute.xlu0 %267
    %271 = vrot.lane.b32.xlu0 %v256, 32
    %v272 = vpop.permute.xlu0 %271
    %v274 = vrot.slane %v256, 2
    %275 = vrot.lane.b32.xlu0 %v274, 40
    %v276 = vpop.permute.xlu0 %275
    %v278 = vrot.slane %v256, 4
    %279 = vrot.lane.b32.xlu0 %v278, 48
    %v280 = vpop.permute.xlu0 %279
    %v282 = vsel %vm75, %v255, %v260
    %vm283 = vcmask 130048
    %v284 = vsel %vm283, %v282, %v264
    %vm285 = vcmask 195584
    %v286 = vsel %vm285, %v284, %v268
    %vm287 = vcmask 261120
    %v288 = vsel %vm287, %v286, %v272
    %vm289 = vcmask 326656
    %v290 = vsel %vm289, %v288, %v276
    %vm291 = vcmask 392192
    %v292 = vsel %vm291, %v290, %v280
    %v293 = vadd.f32 %v241, %v252
    %v294 = vadd.f32 %v242, %v251
    %v295 = vmul.f32 %v293, 0.5
    %v296 = vmul.f32 %v294, 0.5
    %v298 = vrot.slane %v295, 2
    %299 = vrot.lane.b32.xlu0 %v298, 8
    %v300 = vpop.permute.xlu0 %299
    %v302 = vrot.slane %v295, 4
    %303 = vrot.lane.b32.xlu0 %v302, 16
    %v304 = vpop.permute.xlu0 %303
    %v306 = vrot.slane %v295, 6
    %307 = vrot.lane.b32.xlu0 %v306, 24
    %v308 = vpop.permute.xlu0 %307
    %311 = vrot.lane.b32.xlu0 %v296, 32
    %v312 = vpop.permute.xlu0 %311
    %v314 = vrot.slane %v296, 2
    %315 = vrot.lane.b32.xlu0 %v314, 40
    %v316 = vpop.permute.xlu0 %315
    %v318 = vrot.slane %v296, 4
    %319 = vrot.lane.b32.xlu0 %v318, 48
    %v320 = vpop.permute.xlu0 %319
    %v322 = vsel %vm75, %v295, %v300
    %v323 = vsel %vm283, %v322, %v304
    %v324 = vsel %vm285, %v323, %v308
    %v325 = vsel %vm287, %v324, %v312
    %v326 = vsel %vm289, %v325, %v316
    %v327 = vsel %vm291, %v326, %v320
    %v331 = vrot.slane %v244, 1
    %v332 = vrot.slane %v245, 1
    %v333 = vsel %vm52, %v331, %v332
    %v334 = vrot.slane %v246, 1
    %v335 = vsel %vm52, %v332, %v334
    %v339 = vadd.f32 %v244, %v333
    %v340 = vadd.f32 %v245, %v335
    %v341 = vadd.f32 %v246, %v334
    %v342 = vmul.f32 %v339, 0.5
    %v343 = vmul.f32 %v340, 0.5
    %v344 = vmul.f32 %v341, 0.5
    %v346 = vrot.slane %v342, 2
    %347 = vrot.lane.b32.xlu0 %v346, 8
    %v348 = vpop.permute.xlu0 %347
    %v351 = vrot.slane %v343, 4
    %352 = vrot.lane.b32.xlu0 %v351, 16
    %v353 = vpop.permute.xlu0 %352
    %v355 = vrot.slane %v343, 6
    %356 = vrot.lane.b32.xlu0 %v355, 24
    %v357 = vpop.permute.xlu0 %356
    %359 = vrot.lane.b32.xlu0 %v343, 32
    %v360 = vpop.permute.xlu0 %359
    %v362 = vrot.slane %v343, 2
    %363 = vrot.lane.b32.xlu0 %v362, 40
    %v364 = vpop.permute.xlu0 %363
    %v367 = vrot.slane %v344, 4
    %368 = vrot.lane.b32.xlu0 %v367, 48
    %v369 = vpop.permute.xlu0 %368
    %v371 = vsel %vm75, %v342, %v348
    %v372 = vsel %vm283, %v371, %v353
    %v373 = vsel %vm285, %v372, %v357
    %v374 = vsel %vm287, %v373, %v360
    %v375 = vsel %vm289, %v374, %v364
    %v376 = vsel %vm291, %v375, %v369
    %378 = vrot.lane.b32.xlu0 %v327, 56
    %v379 = vpop.permute.xlu0 %378
    %382 = vrot.lane.b32.xlu0 %v292, 112
    %v383 = vpop.permute.xlu0 %382
    %v386 = vrot.slane %v376, 4
    %387 = vrot.lane.b32.xlu0 %v386, 40
    %v388 = vpop.permute.xlu0 %387
    %vm390 = vcmask 457728
    %v391 = vsel %vm390, %v292, %v379
    %vm392 = vcmask 916480
    %v393 = vsel %vm392, %v391, %v383
    %v394 = vsel %vm289, %v383, %v388
    %v396 = vrot.slane %v243, 1
    %v397 = vsel %vm52, %v251, %v396
    %v398 = vsel %vm52, %v396, %v331
    %v402 = vmax.f32 %v242, %v397
    %v403 = vmax.f32 %v243, %v398
    %v404 = vmax.f32 %v244, %v331
    %v406 = vrot.slane %v403, 2
    %407 = vrot.lane.b32.xlu0 %v406, 8
    %v408 = vpop.permute.xlu0 %407
    %v410 = vrot.slane %v403, 4
    %411 = vrot.lane.b32.xlu0 %v410, 16
    %v412 = vpop.permute.xlu0 %411
    %v414 = vrot.slane %v403, 6
    %415 = vrot.lane.b32.xlu0 %v414, 24
    %v416 = vpop.permute.xlu0 %415
    %418 = vrot.lane.b32.xlu0 %v403, 32
    %v419 = vpop.permute.xlu0 %418
    %v422 = vrot.slane %v404, 2
    %423 = vrot.lane.b32.xlu0 %v422, 40
    %v424 = vpop.permute.xlu0 %423
    %v426 = vrot.slane %v404, 4
    %427 = vrot.lane.b32.xlu0 %v426, 48
    %v428 = vpop.permute.xlu0 %427
    %v430 = vsel %vm75, %v402, %v408
    %v431 = vsel %vm283, %v430, %v412
    %v432 = vsel %vm285, %v431, %v416
    %v433 = vsel %vm287, %v432, %v419
    %v434 = vsel %vm289, %v433, %v424
    %v435 = vsel %vm291, %v434, %v428
    %v436 = vadd.f32 %v242, %v397
    %v437 = vadd.f32 %v243, %v398
    %v438 = vadd.f32 %v244, %v331
    %v439 = vmul.f32 %v436, 0.5
    %v440 = vmul.f32 %v437, 0.5
    %v441 = vmul.f32 %v438, 0.5
    %v443 = vrot.slane %v440, 2
    %444 = vrot.lane.b32.xlu0 %v443, 8
    %v445 = vpop.permute.xlu0 %444
    %v447 = vrot.slane %v440, 4
    %448 = vrot.lane.b32.xlu0 %v447, 16
    %v449 = vpop.permute.xlu0 %448
    %v451 = vrot.slane %v440, 6
    %452 = vrot.lane.b32.xlu0 %v451, 24
    %v453 = vpop.permute.xlu0 %452
    %455 = vrot.lane.b32.xlu0 %v440, 32
    %v456 = vpop.permute.xlu0 %455
    %v459 = vrot.slane %v441, 2
    %460 = vrot.lane.b32.xlu0 %v459, 40
    %v461 = vpop.permute.xlu0 %460
    %v463 = vrot.slane %v441, 4
    %464 = vrot.lane.b32.xlu0 %v463, 48
    %v465 = vpop.permute.xlu0 %464
    %v467 = vsel %vm75, %v439, %v445
    %v468 = vsel %vm283, %v467, %v449
    %v469 = vsel %vm285, %v468, %v453
    %v470 = vsel %vm287, %v469, %v456
    %v471 = vsel %vm289, %v470, %v461
    %v472 = vsel %vm291, %v471, %v465
    %v474 = vrot.slane %v247, 1
    %v475 = vsel %vm52, %v334, %v474
    %v478 = vadd.f32 %v246, %v475
    %v479 = vadd.f32 %v247, %v474
    %v480 = vmul.f32 %v478, 0.5
    %v481 = vmul.f32 %v479, 0.5
    %v483 = vrot.slane %v480, 2
    %484 = vrot.lane.b32.xlu0 %v483, 8
    %v485 = vpop.permute.xlu0 %484
    %v487 = vrot.slane %v480, 4
    %488 = vrot.lane.b32.xlu0 %v487, 16
    %v489 = vpop.permute.xlu0 %488
    %v492 = vrot.slane %v481, 6
    %493 = vrot.lane.b32.xlu0 %v492, 24
    %v494 = vpop.permute.xlu0 %493
    %496 = vrot.lane.b32.xlu0 %v481, 32
    %v497 = vpop.permute.xlu0 %496
    %v499 = vrot.slane %v481, 2
    %500 = vrot.lane.b32.xlu0 %v499, 40
    %v501 = vpop.permute.xlu0 %500
    %v503 = vrot.slane %v481, 4
    %504 = vrot.lane.b32.xlu0 %v503, 48
    %v505 = vpop.permute.xlu0 %504
    %v507 = vsel %vm75, %v480, %v485
    %v508 = vsel %vm283, %v507, %v489
    %v509 = vsel %vm285, %v508, %v494
    %v510 = vsel %vm287, %v509, %v497
    %v511 = vsel %vm289, %v510, %v501
    %v512 = vsel %vm291, %v511, %v505
    %514 = vrot.lane.b32.xlu0 %v472, 56
    %v515 = vpop.permute.xlu0 %514
    %518 = vrot.lane.b32.xlu0 %v435, 112
    %v519 = vpop.permute.xlu0 %518
    %v522 = vrot.slane %v512, 4
    %523 = vrot.lane.b32.xlu0 %v522, 40
    %v524 = vpop.permute.xlu0 %523
    %v526 = vsel %vm390, %v435, %v515
    %v527 = vsel %vm392, %v526, %v519
    %v528 = vsel %vm289, %v519, %v524
    %v531 = vrot.slane %v527, 5
    %v532 = vrot.slane %v528, 5
    %vm535 = vcmask 1040384
    %v536 = vsel %vm535, %v393, %v531
    %v537 = vsel %vm535, %v394, %v532
    %v538 = vsel %vm167, %v536, 0.0
    %v539 = vrot.slane %v538, 4
    %v540 = vadd.f32 %v538, %v539
    %v541 = vrot.slane %v540, 2
    %v542 = vadd.f32 %v540, %v541
    %v543 = vrot.slane %v542, 1
    %v544 = vadd.f32 %v542, %v543
    %vm545 = vcmask 779264
    %v546 = vsel %vm545, %v537, 0.0
    %v547 = vrot.slane %v546, 4
    %v548 = vadd.f32 %v546, %v547
    %v549 = vrot.slane %v548, 2
    %v550 = vadd.f32 %v548, %v549
    %v551 = vrot.slane %v550, 1
    %v552 = vadd.f32 %v550, %v551
    %v553 = vrcp.pop 2.0
    %v554 = vmul.f32 2.0, %v553
    %v555 = vsub.f32 1.0, %v554
    %v556 = vmul.f32 %v553, %v555
    %v557 = vadd.f32 %v553, %v556
    %vm558 = vweird.f32 %v553
    %v559 = vsel %vm558, %v553, %v557
    %v560 = vmul.f32 %v544, %v559
    %v561 = vmul.f32 %v552, %v559
    %v562 = vsub.f32 %v536, %v560
    %v563 = vsub.f32 %v537, %v561
    %v564 = vmul.f32 %v562, %v562
    %v565 = vmul.f32 %v563, %v563
    %v566 = vsel %vm167, %v564, 0.0
    %v567 = vrot.slane %v566, 4
    %v568 = vadd.f32 %v566, %v567
    %v569 = vrot.slane %v568, 2
    %v570 = vadd.f32 %v568, %v569
    %v571 = vrot.slane %v570, 1
    %v572 = vadd.f32 %v570, %v571
    %v573 = vsel %vm545, %v565, 0.0
    %v574 = vrot.slane %v573, 4
    %v575 = vadd.f32 %v573, %v574
    %v576 = vrot.slane %v575, 2
    %v577 = vadd.f32 %v575, %v576
    %v578 = vrot.slane %v577, 1
    %v579 = vadd.f32 %v577, %v578
    %v580 = vmul.f32 %v572, %v559
    %v581 = vmul.f32 %v579, %v559
    %v582 = vadd.f32 %v580, 1e-05
    %v583 = vadd.f32 %v581, 1e-05
    %v584 = vrsqrt.pop %v582
    %v585 = vmul.f32 %v584, %v582
    %v586 = vmul.f32 %v585, %v584
    %v587 = vmul.f32 0.5, %v586
    %v588 = vsub.f32 1.5, %v587
    %v589 = vmul.f32 %v584, %v588
    %vm590 = vweird.f32 %v582
    %vm591 = vweird.f32 %v584
    %vm592 = vmor %vm590, %vm591
    %v593 = vsel %vm592, %v584, %v589
    %v594 = vrsqrt.pop %v583
    %v595 = vmul.f32 %v594, %v583
    %v596 = vmul.f32 %v595, %v594
    %v597 = vmul.f32 0.5, %v596
    %v598 = vsub.f32 1.5, %v597
    %v599 = vmul.f32 %v594, %v598
    %vm600 = vweird.f32 %v583
    %vm601 = vweird.f32 %v594
    %vm602 = vmor %vm600, %vm601
    %v603 = vsel %vm602, %v594, %v599
    %v604 = vmul.f32 %v562, %v593
    %v605 = vmul.f32 %v563, %v603
    %v606 = vld [vmem:[%s4] sm:$0x3]
    %v608 = vperm.slane %v606, 0
    %v609 = vperm.slane %v606, 1
    %v612 = vmul.f32 %v604, %v608
    %v613 = vmul.f32 %v605, %v609
    %v614 = vld [vmem:[%s5] sm:$0x3]
    %v616 = vperm.slane %v614, 0
    %v617 = vperm.slane %v614, 1
    %v620 = vadd.f32 %v612, %v616
    %v621 = vadd.f32 %v613, %v617
    %v622 = vld [vmem:[%s6] sm:$0xff]
    %v623 = vld [vmem:[%s6 + $0x8] sm:$0xff]
    %v624 = vld [vmem:[%s6 + $0x10] sm:$0xff]
    %v625 = vld [vmem:[%s6 + $0x18] sm:$0xff]
    %v626 = vld [vmem:[%s6 + $0x20] sm:$0xff]
    %v627 = vld [vmem:[%s6 + $0x28] sm:$0xff]
    %v628 = vld [vmem:[%s6 + $0x30] sm:$0xff]
    %v629 = vld [vmem:[%s6 + $0x38] sm:$0xff]
    %v630 = vld [vmem:[%s6 + $0x40] sm:$0xff]
    %v631 = vld [vmem:[%s6 + $0x48] sm:$0xff]
    %v632 = vld [vmem:[%s6 + $0x50] sm:$0xff]
    %v633 = vld [vmem:[%s6 + $0x58] sm:$0xff]
    %v634 = vld [vmem:[%s6 + $0x60] sm:$0xff]
    %v635 = vld [vmem:[%s6 + $0x68] sm:$0xff]
    %v636 = vld [vmem:[%s6 + $0x70] sm:$0xff]
    %v637 = vld [vmem:[%s6 + $0x78] sm:$0xff]
    %v638 = vld [vmem:[%s6 + $0x80] sm:$0xff]
    %v639 = vld [vmem:[%s6 + $0x88] sm:$0xff]
    %v640 = vld [vmem:[%s6 + $0x90] sm:$0xff]
    %v641 = vld [vmem:[%s6 + $0x98] sm:$0xff]
    %v642 = vld [vmem:[%s6 + $0xa0] sm:$0xff]
    %v643 = vld [vmem:[%s6 + $0xa8] sm:$0xff]
    %v644 = vld [vmem:[%s6 + $0xb0] sm:$0xff]
    %v645 = vld [vmem:[%s6 + $0xb8] sm:$0xff]
    %v646 = vld [vmem:[%s6 + $0xc0] sm:$0xff]
    %v647 = vld [vmem:[%s6 + $0xc8] sm:$0xff]
    %v648 = vld [vmem:[%s6 + $0xd0] sm:$0xff]
    %v649 = vld [vmem:[%s6 + $0xd8] sm:$0xff]
    %v650 = vld [vmem:[%s7] sm:$0x1]
    %v652 = vperm.slane %v650, 0
    %vm654 = vcmask 785408
    %v656 = vsel %vm654, %v621, 0
    %658 = vmatpush.msra.mxu0 %v637
    %659 = vmatpush.msra.mxu0 %v636
    %660 = vmatpush.msra.mxu0 %v635
    %661 = vmatpush.msra.mxu0 %v634
    %662 = vmatpush.msra.mxu0 %v633
    %663 = vmatpush.msra.mxu0 %v632
    %664 = vmatpush.msra.mxu0 %v631
    %665 = vmatpush.msra.mxu0 %v630
    %666 = vmatpush.msra.mxu0 %v629
    %667 = vmatpush.msra.mxu0 %v628
    %668 = vmatpush.msra.mxu0 %v627
    %669 = vmatpush.msra.mxu0 %v626
    %670 = vmatpush.msra.mxu0 %v625
    %671 = vmatpush.msra.mxu0 %v624
    %672 = vmatpush.msra.mxu0 %v623
    %673 = vmatpush.msra.mxu0 %v622
    %674 = vmatmul.f32.gmra.mxu0 %v620
    %v675 = vpop.f32.mrf.mxu0
    %v676 = vadd.f32 %v652, %v675
    %677 = vdwg.mxu0
    %678 = vmatpush.msra.mxu0 0.0
    %679 = vmatpush.msra.mxu0 0.0
    %680 = vmatpush.msra.mxu0 0.0
    %681 = vmatpush.msra.mxu0 0.0
    %682 = vmatpush.msra.mxu0 %v649
    %683 = vmatpush.msra.mxu0 %v648
    %684 = vmatpush.msra.mxu0 %v647
    %685 = vmatpush.msra.mxu0 %v646
    %686 = vmatpush.msra.mxu0 %v645
    %687 = vmatpush.msra.mxu0 %v644
    %688 = vmatpush.msra.mxu0 %v643
    %689 = vmatpush.msra.mxu0 %v642
    %690 = vmatpush.msra.mxu0 %v641
    %691 = vmatpush.msra.mxu0 %v640
    %692 = vmatpush.msra.mxu0 %v639
    %693 = vmatpush.msra.mxu0 %v638
    %694 = vmatmul.f32.gmra.mxu0 %v656
    %v695 = vpop.f32.mrf.mxu0
    %v696 = vadd.f32 %v676, %v695
    %697 = vdwg.mxu0
    %v698 = vld [vmem:[%s8] sm:$0xff]
    %v699 = vld [vmem:[%s8 + $0x8] sm:$0xff]
    %v700 = vld [vmem:[%s8 + $0x10] sm:$0xff]
    %v701 = vld [vmem:[%s8 + $0x18] sm:$0xff]
    %v702 = vld [vmem:[%s9] sm:$0x1]
    %v704 = vperm.slane %v702, 0
    %v707 = vsel %vm287, %v696, 0
    %709 = vmatpush.msra.mxu0 0.0
    %710 = vmatpush.msra.mxu0 0.0
    %711 = vmatpush.msra.mxu0 0.0
    %712 = vmatpush.msra.mxu0 0.0
    %713 = vmatpush.msra.mxu0 0.0
    %714 = vmatpush.msra.mxu0 0.0
    %715 = vmatpush.msra.mxu0 0.0
    %716 = vmatpush.msra.mxu0 0.0
    %717 = vmatpush.msra.mxu0 0.0
    %718 = vmatpush.msra.mxu0 0.0
    %719 = vmatpush.msra.mxu0 0.0
    %720 = vmatpush.msra.mxu0 0.0
    %721 = vmatpush.msra.mxu0 %v701
    %722 = vmatpush.msra.mxu0 %v700
    %723 = vmatpush.msra.mxu0 %v699
    %724 = vmatpush.msra.mxu0 %v698
    %725 = vmatmul.f32.gmra.mxu0 %v707
    %v726 = vpop.f32.mrf.mxu0
    %v727 = vadd.f32 %v704, %v726
    %728 = vdwg.mxu0
    %v729 = vld [vmem:[%s10] sm:$0xff]
    %v730 = vld [vmem:[%s10 + $0x8] sm:$0xff]
    %v731 = vld [vmem:[%s11] sm:$0x1]
    %v733 = vperm.slane %v731, 0
    %v736 = vsel %vm283, %v727, 0
    %738 = vmatpush.msra.mxu0 0.0
    %739 = vmatpush.msra.mxu0 0.0
    %740 = vmatpush.msra.mxu0 0.0
    %741 = vmatpush.msra.mxu0 0.0
    %742 = vmatpush.msra.mxu0 0.0
    %743 = vmatpush.msra.mxu0 0.0
    %744 = vmatpush.msra.mxu0 0.0
    %745 = vmatpush.msra.mxu0 0.0
    %746 = vmatpush.msra.mxu0 0.0
    %747 = vmatpush.msra.mxu0 0.0
    %748 = vmatpush.msra.mxu0 0.0
    %749 = vmatpush.msra.mxu0 0.0
    %750 = vmatpush.msra.mxu0 0.0
    %751 = vmatpush.msra.mxu0 0.0
    %752 = vmatpush.msra.mxu0 %v730
    %753 = vmatpush.msra.mxu0 %v729
    %754 = vmatmul.f32.gmra.mxu0 %v736
    %v755 = vpop.f32.mrf.mxu0
    %v756 = vadd.f32 %v733, %v755
    %757 = vdwg.mxu0
    %vm758 = vcmask 25600
    %759 = vst.msk [vmem:[#allocation2] sm:$0x3] %vm758, %v756
    // Predicated region
    $region50: #{forward.1} parent=1 // pred_check
      _
    $region51: #{forward.1} parent=1 // pred_check_branch
      %761 = sbr.rel (0) target = $region53
    $region52: #{forward.1} parent=1 // pred_region
      %763 = vsyncadd [#allocation3], 0
      %s765 = sshll.u32 [#allocation2], 4
      %s766 = int_to_ptr.vmem [resolvable:$true] %s765
      %s767 = sshll.u32 %s12, 4
      %s768 = int_to_ptr.hbm [resolvable:$true] %s767
      %770 = dma.vmem_to_hbm [thread:$0]  %s766, 32, %s768, [#allocation3]
    $region53: #{forward.1} parent=1 // pred_fallthru
      _
    // Predicated region
    $region54: #{forward.1} parent=1 // pred_check
      _
    $region55: #{forward.1} parent=1 // pred_check_branch
      %772 = sbr.rel (0) target = $region57
    $region56: #{forward.1} parent=1 // pred_region
      %774 = dma.done [#allocation3], 32
    $region57: #{forward.1} parent=1 // pred_fallthru
      _
    %775 = vsyncpa [#allocation3], 1

</llo_original>
